<compile_context>
chip_gen: v7x
topology: tpu7x:2x2x1
jax: 0.10.0
libtpu: 0.0.40
codegen_flags: <defaults>
</compile_context>

<pallas_src>
import math

import jax
import jax.numpy as jnp
from jax.experimental import pallas as pl
from jax.experimental.pallas import tpu as pltpu


def _dma_copy_kernel(x_hbm, o_hbm, sem):
    # Single bulk HBM->HBM DMA: the TensorCore issues one descriptor and waits.
    cp = pltpu.make_async_copy(x_hbm, o_hbm, sem)
    cp.start()
    cp.wait()


def _flatten_out_shape(shape, dim):
    ndim = len(shape)
    if ndim == 0:
        # torch.flatten of a 0-d tensor returns a 1-element 1-d tensor.
        return (1,)
    d = dim if dim >= 0 else dim + ndim
    if not (0 <= d < ndim):
        raise ValueError(f"dim {dim} out of range for rank {ndim}")
    return shape[:d] + (int(math.prod(shape[d:])),)


def _pallas_copy(x: jax.Array) -> jax.Array:
    """Bit-exact copy of `x` into a fresh HBM buffer via one HBM->HBM DMA."""
    return pl.pallas_call(
        _dma_copy_kernel,
        out_shape=jax.ShapeDtypeStruct(x.shape, x.dtype),
        in_specs=[pl.BlockSpec(memory_space=pl.ANY)],
        out_specs=pl.BlockSpec(memory_space=pl.ANY),
        scratch_shapes=[pltpu.SemaphoreType.DMA(())],
    )(x)


def pallas_flatten(feat: jax.Array, dim: int = -1, *, copy: bool = False) -> jax.Array:
    """Equivalent of torch.flatten(feat, start_dim=dim).

    copy=False (default): metadata-only reshape (zero HBM traffic) — this is
    the semantically correct and fastest path, per the perf review.
    copy=True: additionally materializes the result into a fresh buffer using
    a single Pallas HBM->HBM DMA copy kernel.
    """
    out_shape = _flatten_out_shape(feat.shape, dim)

    if not copy:
        return feat.reshape(out_shape)

    total = int(math.prod(out_shape))
    if total == 0:
        return feat.reshape(out_shape)

    # Metadata-only reshape, then one contiguous bulk DMA into a new buffer.
    x = feat.reshape(out_shape)
    return _pallas_copy(x)


class Flatten:
    """Mirror of the PyTorch module (no parameters)."""

    def __init__(self, dim: int = -1):
        self.dim = dim

    def __call__(self, feat: jax.Array, *, copy: bool = False) -> jax.Array:
        return pallas_flatten(feat, self.dim, copy=copy)


if __name__ == "__main__":
    key = jax.random.PRNGKey(0)
    # NCHW, small shapes consistent with a conv feature map.
    x = jax.random.normal(key, (2, 4, 16, 16), dtype=jnp.float32)

    # ---- Default (zero-copy) paths: pure metadata reshape ----
    y_default = jax.block_until_ready(Flatten(dim=-1)(x))
    assert y_default.shape == x.shape
    assert jnp.array_equal(y_default, x)

    y1 = jax.block_until_ready(Flatten(dim=1)(x))
    assert y1.shape == (2, 4 * 16 * 16)
    assert jnp.array_equal(y1, x.reshape(2, -1))

    y0 = jax.block_until_ready(Flatten(dim=0)(x))
    assert y0.shape == (2 * 4 * 16 * 16,)
    assert jnp.array_equal(y0, x.reshape(-1))

    # ---- Materialized-copy path: single HBM->HBM DMA Pallas kernel ----
    yc1 = jax.block_until_ready(Flatten(dim=1)(x, copy=True))
    assert yc1.shape == (2, 4 * 16 * 16)
    assert jnp.array_equal(yc1, x.reshape(2, -1))

    yc0 = jax.block_until_ready(Flatten(dim=0)(x, copy=True))
    assert yc0.shape == (2 * 4 * 16 * 16,)
    assert jnp.array_equal(yc0, x.reshape(-1))

    # Sub-32-bit dtype (bf16): DMA copies bytes, layout rules don't apply.
    xb = x.astype(jnp.bfloat16)
    ycb = jax.block_until_ready(Flatten(dim=1)(xb, copy=True))
    assert ycb.shape == (2, 4 * 16 * 16)
    assert jnp.array_equal(ycb, xb.reshape(2, -1))

    print("KERNEL_OK")
</pallas_src>

<mosaic_0001>
module attributes {stable_mosaic.version = 11 : i64} {
  func.func @_dma_copy_kernel(%arg0: memref<2x1024xf32, #tpu.memory_space<any>>, %arg1: memref<2x1024xf32, #tpu.memory_space<any>>, %arg2: memref<!tpu.dma_semaphore, #tpu.memory_space<semaphore_mem>>) attributes {dimension_semantics = [], scalar_prefetch = 0 : i64, scratch_operands = 1 : i64, tpu.core_type = #tpu.core_type<tc>} {
    tpu.enqueue_dma source(%arg0 : memref<2x1024xf32, #tpu.memory_space<any>>) target(%arg1 : memref<2x1024xf32, #tpu.memory_space<any>>) target_semaphore(%arg2 : memref<!tpu.dma_semaphore, #tpu.memory_space<semaphore_mem>>)
    tpu.wait_dma2 semaphore(%arg2 : memref<!tpu.dma_semaphore, #tpu.memory_space<semaphore_mem>>) src(%arg0 : memref<2x1024xf32, #tpu.memory_space<any>>) dst(%arg1 : memref<2x1024xf32, #tpu.memory_space<any>>)
    return
  }
}

</mosaic_0001>

<llo_original>
// kernel: tpu_custom_call.1
$region0: #{tpu_custom_call.1}
  #allocation0 [shape = 'u32[]', space=smem, size = 0x4, offset = 0x4, fixed_abs, tag = 'smem constant byte address 0x4 - core index']
  #allocation1 [shape = 'u32[144,128]{1,0:T(1,128)}', space=vmem, size = 0x12000, scoped, tag = 'internal scratch']
  #allocation2 [shape = 's32[1]{0}', space=sflag, size = 0x4, scoped, tag = 'scratch operand']
  #allocation3 [shape = 's32[]', space=sflag, size = 0x4, offset = 0, fixed_abs, tag = 'sflag constant byte address 0x0 - dummy sync flag']
  #allocation4 [shape = 'u32[0]{0}', space=smem, size = 0, offset = 0, fixed_abs, tag = 'smem constant byte address 0x0 - null']
  %s0 = inlined_call_operand.hbm [shape: f32[2,1024], index: 0, kind: input, shape index: {}]
  %s1 = inlined_call_operand.hbm [shape: f32[2,1024], index: 1, kind: output, shape index: {}]
  %s2 = sld [smem:[#allocation0]]
  $region2: #{tpu_custom_call.1} parent=0
    _
  %s4 = ssub.s32 1, %s2
  %s5 = scalar_select 0, %s4, %s2
  %s7 = sshll.u32 1, 14
  %s8 = sxor.u32 4294967295, %s7
  %s11 = sshll.u32 3, 24
  %s12 = sxor.u32 4294967295, %s11
  %s13 = sand.u32 0, %s12
  %s15 = sor.u32 %s13, 0
  %18 = dma.general %s0, 256, %s1, [#allocation2], [#allocation3], [#allocation4], %s15, 0
  %s19 = smul.u32 2, 1
  %s20 = smul.u32 %s19, 8
  %s21 = sshll.u32 %s20, 4
  %22 = dma.done [#allocation2], %s21
  %23 = vsyncmov [#allocation2]
  %s24 = vpop.sfrf %23
  %p25 = scmp.eq.s32.totalorder %s24, 0
  %p26 = pneg %p25
  %28 = shalt.err (%p26)

</llo_original>
